<compile_context>
chip_gen: v7x
topology: tpu7x:2x2x1
jax: 0.10.0
libtpu: 0.0.40
codegen_flags: <defaults>
</compile_context>

<pallas_src>
import functools

import jax
import jax.numpy as jnp
from jax import lax
from jax.experimental import pallas as pl
from jax.experimental.pallas import tpu as pltpu


def _round_up(n, m):
    return ((n + m - 1) // m) * m


def _bits_to_unit_float(bits):
    """Reinterpret 32-bit random bits as float32 uniform in [0, 1)."""
    bits_u32 = lax.bitcast_convert_type(bits, jnp.uint32)
    # Keep 23 mantissa bits, force exponent to 127 -> value in [1, 2).
    fbits = (bits_u32 >> 9) | jnp.uint32(0x3F800000)
    return lax.bitcast_convert_type(fbits, jnp.float32) - 1.0


def _rpt_prng_kernel(seed_ref, x_ref, o_ref, *, r):
    # Per-block seeding: each grid step (and each TensorCore under "parallel"
    # dimension semantics) draws independent random bits.
    pltpu.prng_seed(seed_ref[0], pl.program_id(0))

    rows, width = x_ref.shape
    half = width // 2

    # Box-Muller using BOTH variates: one pair of uniforms -> two independent
    # N(0,1) samples.  Halves prng_random_bits calls and log/sqrt per element.
    bits1 = pltpu.prng_random_bits((rows, half))
    bits2 = pltpu.prng_random_bits((rows, half))
    u1 = 1.0 - _bits_to_unit_float(bits1)   # in (0, 1] -> log() is finite
    u2 = _bits_to_unit_float(bits2)         # in [0, 1)

    radius = jnp.sqrt(-2.0 * jnp.log(u1))
    theta = (2.0 * jnp.pi) * u2
    z = jnp.concatenate(
        [radius * jnp.cos(theta), radius * jnp.sin(theta)], axis=-1
    )

    x = x_ref[...].astype(jnp.float32)
    o_ref[...] = (x + jnp.float32(r) * z).astype(o_ref.dtype)


def _rpt_add_kernel(x_ref, noise_ref, o_ref, *, r):
    x = x_ref[...].astype(jnp.float32)
    o_ref[...] = (x + jnp.float32(r) * noise_ref[...]).astype(o_ref.dtype)


def rpt_forward(x, *, r=1.0, seed=0):
    """JAX/Pallas equivalent of _RPT(r).forward(x). x may be any shape (NCHW)."""
    # TODO(synk): the PyTorch module draws fresh noise every call; callers that
    # need that behaviour must pass a different `seed` per invocation.
    orig_shape = x.shape
    orig_dtype = x.dtype
    n = x.size
    itemsize = jnp.dtype(orig_dtype).itemsize

    # Lane-dense slab: wide last dim for big inputs (unmasked wide stores, few
    # large DMAs); minimum 256 so the half-width Box-Muller tile is still a
    # full multiple of 128 lanes.
    width = 1024 if n >= 8 * 1024 else 256
    sub_mult = {4: 8, 2: 16, 1: 32}.get(itemsize, 8)
    rows_raw = pl.cdiv(n, width)
    tile_r = min(256, _round_up(rows_raw, sub_mult))   # <= ~1 MiB f32 per tile
    rows = _round_up(rows_raw, tile_r)
    padded = rows * width

    flat = x.reshape(-1)
    if padded != n:
        flat = jnp.pad(flat, (0, padded - n))
    x2d = flat.reshape(rows, width)

    grid = (rows // tile_r,)
    blk = pl.BlockSpec((tile_r, width), lambda i: (i, 0))
    out_shape = jax.ShapeDtypeStruct((rows, width), orig_dtype)

    if jax.default_backend() == "tpu":
        seed_arr = jnp.array([seed], dtype=jnp.int32)
        out2d = pl.pallas_call(
            functools.partial(_rpt_prng_kernel, r=float(r)),
            out_shape=out_shape,
            grid=grid,
            in_specs=[
                pl.BlockSpec(memory_space=pltpu.MemorySpace.SMEM),  # seed
                blk,                                                # x
            ],
            out_specs=blk,
            input_output_aliases={1: 0},
            compiler_params=pltpu.CompilerParams(
                dimension_semantics=("parallel",)
            ),
            cost_estimate=pl.CostEstimate(
                flops=8 * padded,
                transcendentals=2 * padded,
                bytes_accessed=2 * padded * itemsize,
            ),
        )(seed_arr, x2d)
    else:
        # Non-TPU / interpret fallback: the TPU hardware PRNG primitives have
        # no CPU lowering, so generate the noise with jax.random and fuse only
        # the elementwise add in the kernel.
        noise2d = jax.random.normal(
            jax.random.PRNGKey(seed), (rows, width), dtype=jnp.float32
        )
        out2d = pl.pallas_call(
            functools.partial(_rpt_add_kernel, r=float(r)),
            out_shape=out_shape,
            grid=grid,
            in_specs=[blk, blk],
            out_specs=blk,
        )(x2d, noise2d)

    if padded != n:
        return out2d.reshape(-1)[:n].reshape(orig_shape)
    return out2d.reshape(orig_shape)


if __name__ == "__main__":
    key = jax.random.PRNGKey(0)
    # Small NCHW input, consistent with a conv-style module.
    x = jax.random.normal(key, (2, 4, 16, 16), dtype=jnp.float32)

    y = rpt_forward(x, r=1.0, seed=0)
    y = jax.block_until_ready(y)

    assert y.shape == x.shape and y.dtype == x.dtype
    # Sanity: output should differ from input (noise added) and stay finite.
    assert bool(jnp.all(jnp.isfinite(y)))
    assert float(jnp.max(jnp.abs(y - x))) > 0.0

    print("KERNEL_OK")
</pallas_src>

<mosaic_0001>
module attributes {stable_mosaic.version = 11 : i64} {
  func.func @_rpt_add_kernel(%arg0: i32, %arg1: memref<8x256xf32, #tpu.memory_space<vmem>>, %arg2: memref<8x256xf32, #tpu.memory_space<vmem>>, %arg3: memref<8x256xf32, #tpu.memory_space<vmem>>) attributes {dimension_semantics = [#tpu.dimension_semantics<arbitrary>], iteration_bounds = array<i64: 1>, scalar_prefetch = 0 : i64, scratch_operands = 0 : i64, tpu.core_type = #tpu.core_type<tc>, window_params = [{transform_indices = @transform_0, window_bounds = array<i64: 8, 256>}, {transform_indices = @transform_1, window_bounds = array<i64: 8, 256>}, {transform_indices = @transform_2, window_bounds = array<i64: 8, 256>}]} {
    %c0 = arith.constant 0 : index
    %c0_0 = arith.constant 0 : index
    %0 = vector.load %arg1[%c0, %c0_0] : memref<8x256xf32, #tpu.memory_space<vmem>>, vector<8x256xf32>
    %c0_1 = arith.constant 0 : index
    %c0_2 = arith.constant 0 : index
    %1 = vector.load %arg2[%c0_1, %c0_2] : memref<8x256xf32, #tpu.memory_space<vmem>>, vector<8x256xf32>
    %cst = arith.constant 1.000000e+00 : f32
    %2 = vector.broadcast %cst : f32 to vector<8x256xf32>
    %3 = arith.mulf %2, %1 : vector<8x256xf32>
    %4 = arith.addf %0, %3 : vector<8x256xf32>
    %c0_3 = arith.constant 0 : index
    %c0_4 = arith.constant 0 : index
    %5 = vector.load %arg3[%c0_3, %c0_4] : memref<8x256xf32, #tpu.memory_space<vmem>>, vector<8x256xf32>
    tpu.vector_store %arg3[%c0_3, %c0_4], %4 {strides = array<i32>} : memref<8x256xf32, #tpu.memory_space<vmem>>, vector<8x256xf32>,
    return
  }
  func.func @transform_0(%arg0: i32) -> (i32, i32) {
    %c0_i32 = arith.constant 0 : i32
    %c0_i32_0 = arith.constant 0 : i32
    return %arg0, %c0_i32 : i32, i32
  }
  func.func @transform_1(%arg0: i32) -> (i32, i32) {
    %c0_i32 = arith.constant 0 : i32
    %c0_i32_0 = arith.constant 0 : i32
    return %arg0, %c0_i32 : i32, i32
  }
  func.func @transform_2(%arg0: i32) -> (i32, i32) {
    %c0_i32 = arith.constant 0 : i32
    %c0_i32_0 = arith.constant 0 : i32
    return %arg0, %c0_i32 : i32, i32
  }
}

</mosaic_0001>

<llo_original>
// kernel: tpu_custom_call.1
$region0: #{tpu_custom_call.1}
  #allocation0 [shape = 'u32[]', space=smem, size = 0x4, offset = 0x4, fixed_abs, tag = 'smem constant byte address 0x4 - core index']
  #allocation1 [shape = 'u32[144,128]{1,0:T(1,128)}', space=vmem, size = 0x12000, scoped, tag = 'internal scratch']
  %s0 = inlined_call_operand.hbm [shape: f32[8,256], index: 0, kind: input, shape index: {}]
  %s1 = inlined_call_operand.hbm [shape: f32[8,256], index: 1, kind: input, shape index: {}]
  %s2 = inlined_call_operand.hbm [shape: f32[8,256], index: 2, kind: output, shape index: {}]
  %s3 = sld [smem:[#allocation0]]
  $region26: #{tpu_custom_call.1} parent=0
    _
  %s5 = ssub.s32 1, %s3
  %s6 = scalar_select 0, %s5, %s3
  $region1: #{tpu_custom_call.1} parent=0
    #allocation2 [shape = 'u8[8192]{0}', space=vmem, size = 0x2000, scoped, tag = 'input window, operand 0, single buffered']
    #allocation3 [shape = 's32[1]{0}', space=sflag, size = 0x4, scoped, tag = 'scoped memory for tpu_custom_call.1']
    #allocation4 [shape = 's32[1]{0}', space=sflag, size = 0x4, scoped, tag = 'scoped memory for tpu_custom_call.1']
    #allocation5 [shape = 'u8[8192]{0}', space=vmem, size = 0x2000, scoped, tag = 'input window, operand 1, single buffered']
    #allocation6 [shape = 's32[1]{0}', space=sflag, size = 0x4, scoped, tag = 'scoped memory for tpu_custom_call.1']
    #allocation7 [shape = 'u8[8192]{0}', space=vmem, size = 0x2000, scoped, tag = 'output window, operand 0, single buffered']
    %7 = vsyncpa [#allocation3], 0
    %8 = vsyncpa [#allocation6], 0
    %9 = vsyncpa [#allocation4], 0
    // Predicated region
    $region2: #{tpu_custom_call.1} parent=1 // pred_check
      _
    $region3: #{tpu_custom_call.1} parent=1 // pred_check_branch
      %11 = sbr.rel (0) target = $region5
    $region4: #{tpu_custom_call.1} parent=1 // pred_region
      %s13 = ssub.s32 256, 256
      %14 = vsyncadd [#allocation3], %s13
      %s16 = sshll.u32 [#allocation2], 4
      %s17 = int_to_ptr.vmem [resolvable:$true] %s16
      %19 = dma.hbm_to_vmem [thread:$0]  %s0, 256, %s17, [#allocation3]
    $region5: #{tpu_custom_call.1} parent=1 // pred_fallthru
      _
    // Predicated region
    $region6: #{tpu_custom_call.1} parent=1 // pred_check
      _
    $region7: #{tpu_custom_call.1} parent=1 // pred_check_branch
      %21 = sbr.rel (0) target = $region9
    $region8: #{tpu_custom_call.1} parent=1 // pred_region
      %s23 = ssub.s32 256, 256
      %24 = vsyncadd [#allocation6], %s23
      %s26 = sshll.u32 [#allocation5], 4
      %s27 = int_to_ptr.vmem [resolvable:$true] %s26
      %29 = dma.hbm_to_vmem [thread:$0]  %s1, 256, %s27, [#allocation6]
    $region9: #{tpu_custom_call.1} parent=1 // pred_fallthru
      _
    // Predicated region
    $region10: #{tpu_custom_call.1} parent=1 // pred_check
      _
    $region11: #{tpu_custom_call.1} parent=1 // pred_check_branch
      %31 = sbr.rel (0) target = $region13
    $region12: #{tpu_custom_call.1} parent=1 // pred_region
      %32 = dma.done [#allocation3], 256
    $region13: #{tpu_custom_call.1} parent=1 // pred_fallthru
      _
    // Predicated region
    $region14: #{tpu_custom_call.1} parent=1 // pred_check
      _
    $region15: #{tpu_custom_call.1} parent=1 // pred_check_branch
      %34 = sbr.rel (0) target = $region17
    $region16: #{tpu_custom_call.1} parent=1 // pred_region
      %35 = dma.done [#allocation6], 256
    $region17: #{tpu_custom_call.1} parent=1 // pred_fallthru
      _
    %v36 = vld [vmem:[#allocation2] sm:$0xff]
    %v37 = vld [vmem:[#allocation2 + $0x8] sm:$0xff]
    %v38 = vld [vmem:[#allocation5] sm:$0xff]
    %v39 = vld [vmem:[#allocation5 + $0x8] sm:$0xff]
    %v40 = vadd.f32 %v36, %v38
    %v41 = vadd.f32 %v37, %v39
    %42 = vst [vmem:[#allocation7] sm:$0xff] %v40
    %43 = vst [vmem:[#allocation7 + $0x8] sm:$0xff] %v41
    // Predicated region
    $region18: #{tpu_custom_call.1} parent=1 // pred_check
      _
    $region19: #{tpu_custom_call.1} parent=1 // pred_check_branch
      %45 = sbr.rel (0) target = $region21
    $region20: #{tpu_custom_call.1} parent=1 // pred_region
      %s47 = ssub.s32 256, 256
      %48 = vsyncadd [#allocation4], %s47
      %s50 = sshll.u32 [#allocation7], 4
      %s51 = int_to_ptr.vmem [resolvable:$true] %s50
      %53 = dma.vmem_to_hbm [thread:$0]  %s51, 256, %s2, [#allocation4]
    $region21: #{tpu_custom_call.1} parent=1 // pred_fallthru
      _
    // Predicated region
    $region22: #{tpu_custom_call.1} parent=1 // pred_check
      _
    $region23: #{tpu_custom_call.1} parent=1 // pred_check_branch
      %55 = sbr.rel (0) target = $region25
    $region24: #{tpu_custom_call.1} parent=1 // pred_region
      %56 = dma.done [#allocation4], 256
    $region25: #{tpu_custom_call.1} parent=1 // pred_fallthru
      _
    %57 = vsyncpa [#allocation3], 1
    %58 = vsyncpa [#allocation6], 1
    %59 = vsyncpa [#allocation4], 1

</llo_original>
